<compile_context>
chip_gen: v7x
topology: tpu7x:2x2x1
jax: 0.10.0
libtpu: 0.0.40
codegen_flags: <defaults>
</compile_context>

<pallas_src>
import math

import jax
import jax.numpy as jnp
from jax import lax
from jax.experimental import pallas as pl
from jax.experimental.pallas import tpu as pltpu


def mlp_kernel(x_ref,
               w1_ref, b1_ref,
               w2_ref, b2_ref,
               w3_ref, b3_ref,
               w4_ref, b4_ref,
               w5t_ref, b5_ref,
               o_ref):
    """Fused 5-layer MLP on one batch tile.

    Layouts:
      x_ref : (TB, n_input)  f32  natural PyTorch layout, tiled over batch
      wN    : (out_f, in_f)  f32  native nn.Linear layout
      bN    : (out_f, 1)     f32  broadcasts over the lane (batch) axis
      w5t   : (n_half, 1)    f32  fc5 weight, transposed
      o_ref : (1, TB)        f32  lane-dense output row
    """
    x = x_ref[...]                                    # (TB, n_in) f32

    # Layer 1: contract x's feature axis (1) with w1's in_features axis (1)
    # -> (n_hidden, TB).  Batch lands on lanes for the rest of the network.
    h = lax.dot_general(w1_ref[...], x, (((1,), (1,)), ((), ())),
                        preferred_element_type=jnp.float32)
    h = jnp.maximum(h + b1_ref[...], 0.0)

    for w_ref, b_ref in ((w2_ref, b2_ref), (w3_ref, b3_ref), (w4_ref, b4_ref)):
        h = jnp.dot(w_ref[...], h, preferred_element_type=jnp.float32)
        h = jnp.maximum(h + b_ref[...], 0.0)

    # fc5: (1, n_half) @ (n_half, TB).  M=1, K=16 would waste an MXU push/pop;
    # use a VPU broadcast-multiply + XLU sublane reduction instead.
    out = jnp.sum(w5t_ref[...] * h, axis=0, keepdims=True) + b5_ref[...]
    o_ref[...] = out.astype(o_ref.dtype)


def _round_up(x, m):
    return (x + m - 1) // m * m


def _pick_tile(batch, max_tb=2048):
    """Large tiles amortize per-step overhead; keep >= 2 tiles when the batch
    allows it so both v7x TensorCores get work (no cost on v5e/v6e)."""
    b128 = _round_up(max(batch, 1), 128)
    if b128 < 256:
        return b128
    return min(max_tb, _round_up(b128 // 2, 128))


def net_forward(x, params, *, tb=None):
    """x: (B, n_input) float32 -> (B, 1) float32."""
    (w1, b1), (w2, b2), (w3, b3), (w4, b4), (w5, b5) = params
    B, n_in = x.shape
    if tb is None:
        tb = _pick_tile(B)
    n_tiles = pl.cdiv(B, tb)
    b_pad = n_tiles * tb
    if b_pad != B:
        x = jnp.pad(x, ((0, b_pad - B), (0, 0)))       # pad batch rows only

    w5t = w5.T                                          # (n_half, 1), 64 bytes

    def resident(a):
        # Single full-array block with a constant index -> stays VMEM-resident
        # across all grid steps (no per-step DMA).
        return pl.BlockSpec(a.shape, lambda i: (0, 0))

    in_specs = [
        pl.BlockSpec((tb, n_in), lambda i: (i, 0)),     # x tile, pipelined
        resident(w1), resident(b1),
        resident(w2), resident(b2),
        resident(w3), resident(b3),
        resident(w4), resident(b4),
        resident(w5t), resident(b5),
    ]
    out_spec = pl.BlockSpec((1, tb), lambda i: (0, i))  # lane-dense output row

    out = pl.pallas_call(
        mlp_kernel,
        out_shape=jax.ShapeDtypeStruct((1, b_pad), jnp.float32),
        grid=(n_tiles,),
        in_specs=in_specs,
        out_specs=out_spec,
        compiler_params=pltpu.CompilerParams(
            dimension_semantics=("parallel",)),
    )(x, w1, b1, w2, b2, w3, b3, w4, b4, w5t, b5)

    return out[:, :B].T                                 # (B, 1)


def init_params(key, n_input, n_hidden):
    """Deterministic init mimicking nn.Linear default (uniform +/- 1/sqrt(fan_in)).

    Weights in PyTorch layout (out_features, in_features), f32;
    biases as (out_features, 1), f32.
    """
    n_half = n_hidden // 2
    layer_dims = [
        (n_input, n_hidden),
        (n_hidden, n_half),
        (n_half, n_half),
        (n_half, n_half),
        (n_half, 1),
    ]
    params = []
    for fan_in, fan_out in layer_dims:
        key, kw, kb = jax.random.split(key, 3)
        bound = 1.0 / math.sqrt(fan_in)
        w = jax.random.uniform(kw, (fan_out, fan_in), jnp.float32, -bound, bound)
        b = jax.random.uniform(kb, (fan_out, 1), jnp.float32, -bound, bound)
        params.append((w, b))
    return params


def reference_forward(x, params):
    """Pure-JAX f32 reference (matches the PyTorch forward)."""
    h = x
    for i, (w, b) in enumerate(params):
        h = h @ w.T + b.reshape(1, -1)
        if i < len(params) - 1:
            h = jnp.maximum(h, 0.0)
    return h                                            # (B, 1) f32


if __name__ == "__main__":
    # Shapes consistent with the module: n_input=32, n_hidden=32 (n_half=16).
    # batch=300 -> two 256-wide tiles (exercises the multi-step pipelined grid,
    # v7x 2-TC split, and the padded-batch slice-off path).
    batch = 300
    n_input = 32
    n_hidden = 32

    key = jax.random.PRNGKey(0)
    key, kx = jax.random.split(key)
    x = jax.random.normal(kx, (batch, n_input), jnp.float32)
    params = init_params(key, n_input, n_hidden)

    out = jax.block_until_ready(net_forward(x, params))
    ref = reference_forward(x, params)

    assert out.shape == (batch, 1), out.shape
    assert jnp.allclose(out, ref, atol=2e-2, rtol=2e-2), "mismatch vs reference"

    print("KERNEL_OK")
</pallas_src>

<mosaic_0001>
module attributes {stable_mosaic.version = 11 : i64} {
  func.func @mlp_kernel(%arg0: i32, %arg1: memref<256x32xf32, #tpu.memory_space<vmem>>, %arg2: memref<32x32xf32, #tpu.memory_space<vmem>>, %arg3: memref<32x1xf32, #tpu.memory_space<vmem>>, %arg4: memref<16x32xf32, #tpu.memory_space<vmem>>, %arg5: memref<16x1xf32, #tpu.memory_space<vmem>>, %arg6: memref<16x16xf32, #tpu.memory_space<vmem>>, %arg7: memref<16x1xf32, #tpu.memory_space<vmem>>, %arg8: memref<16x16xf32, #tpu.memory_space<vmem>>, %arg9: memref<16x1xf32, #tpu.memory_space<vmem>>, %arg10: memref<16x1xf32, #tpu.memory_space<vmem>>, %arg11: memref<1x1xf32, #tpu.memory_space<vmem>>, %arg12: memref<1x256xf32, #tpu.memory_space<vmem>>) attributes {dimension_semantics = [#tpu.dimension_semantics<parallel>], iteration_bounds = array<i64: 2>, scalar_prefetch = 0 : i64, scratch_operands = 0 : i64, tpu.core_type = #tpu.core_type<tc>, window_params = [{transform_indices = @transform_0, window_bounds = array<i64: 256, 32>}, {pipeline_mode = #tpu.pipeline_mode<synchronous>, transform_indices = @transform_1, window_bounds = array<i64: 32, 32>}, {pipeline_mode = #tpu.pipeline_mode<synchronous>, transform_indices = @transform_2, window_bounds = array<i64: 32, 1>}, {pipeline_mode = #tpu.pipeline_mode<synchronous>, transform_indices = @transform_3, window_bounds = array<i64: 16, 32>}, {pipeline_mode = #tpu.pipeline_mode<synchronous>, transform_indices = @transform_4, window_bounds = array<i64: 16, 1>}, {pipeline_mode = #tpu.pipeline_mode<synchronous>, transform_indices = @transform_5, window_bounds = array<i64: 16, 16>}, {pipeline_mode = #tpu.pipeline_mode<synchronous>, transform_indices = @transform_6, window_bounds = array<i64: 16, 1>}, {pipeline_mode = #tpu.pipeline_mode<synchronous>, transform_indices = @transform_7, window_bounds = array<i64: 16, 16>}, {pipeline_mode = #tpu.pipeline_mode<synchronous>, transform_indices = @transform_8, window_bounds = array<i64: 16, 1>}, {pipeline_mode = #tpu.pipeline_mode<synchronous>, transform_indices = @transform_9, window_bounds = array<i64: 16, 1>}, {pipeline_mode = #tpu.pipeline_mode<synchronous>, transform_indices = @transform_10, window_bounds = array<i64: 1, 1>}, {transform_indices = @transform_11, window_bounds = array<i64: 1, 256>}]} {
    %c0 = arith.constant 0 : index
    %c0_0 = arith.constant 0 : index
    %0 = vector.load %arg1[%c0, %c0_0] : memref<256x32xf32, #tpu.memory_space<vmem>>, vector<256x32xf32>
    %c0_1 = arith.constant 0 : index
    %c0_2 = arith.constant 0 : index
    %1 = vector.load %arg2[%c0_1, %c0_2] : memref<32x32xf32, #tpu.memory_space<vmem>>, vector<32x32xf32>
    %cst = arith.constant dense<0.000000e+00> : vector<32x256xf32>
    %2 = tpu.matmul %1, %0, %cst {dimension_numbers = #tpu.dot_dimension_numbers<[1], [1], [0], [0], [0, 0, 1, 0], [], []>} : vector<32x32xf32>, vector<256x32xf32>, vector<32x256xf32> -> vector<32x256xf32>
    %c0_3 = arith.constant 0 : index
    %c0_4 = arith.constant 0 : index
    %3 = vector.load %arg3[%c0_3, %c0_4] : memref<32x1xf32, #tpu.memory_space<vmem>>, vector<32x1xf32>
    %4 = vector.broadcast %3 : vector<32x1xf32> to vector<32x256xf32>
    %5 = arith.addf %2, %4 : vector<32x256xf32>
    %cst_5 = arith.constant 0.000000e+00 : f32
    %6 = vector.broadcast %cst_5 : f32 to vector<32x256xf32>
    %7 = arith.maximumf %5, %6 : vector<32x256xf32>
    %c0_6 = arith.constant 0 : index
    %c0_7 = arith.constant 0 : index
    %8 = vector.load %arg4[%c0_6, %c0_7] : memref<16x32xf32, #tpu.memory_space<vmem>>, vector<16x32xf32>
    %cst_8 = arith.constant dense<0.000000e+00> : vector<16x256xf32>
    %9 = tpu.matmul %8, %7, %cst_8 {dimension_numbers = #tpu.dot_dimension_numbers<[1], [0], [0], [1], [0, 0, 1, 1], [], []>} : vector<16x32xf32>, vector<32x256xf32>, vector<16x256xf32> -> vector<16x256xf32>
    %c0_9 = arith.constant 0 : index
    %c0_10 = arith.constant 0 : index
    %10 = vector.load %arg5[%c0_9, %c0_10] : memref<16x1xf32, #tpu.memory_space<vmem>>, vector<16x1xf32>
    %11 = vector.broadcast %10 : vector<16x1xf32> to vector<16x256xf32>
    %12 = arith.addf %9, %11 : vector<16x256xf32>
    %cst_11 = arith.constant 0.000000e+00 : f32
    %13 = vector.broadcast %cst_11 : f32 to vector<16x256xf32>
    %14 = arith.maximumf %12, %13 : vector<16x256xf32>
    %c0_12 = arith.constant 0 : index
    %c0_13 = arith.constant 0 : index
    %15 = vector.load %arg6[%c0_12, %c0_13] : memref<16x16xf32, #tpu.memory_space<vmem>>, vector<16x16xf32>
    %cst_14 = arith.constant dense<0.000000e+00> : vector<16x256xf32>
    %16 = tpu.matmul %15, %14, %cst_14 {dimension_numbers = #tpu.dot_dimension_numbers<[1], [0], [0], [1], [0, 0, 1, 1], [], []>} : vector<16x16xf32>, vector<16x256xf32>, vector<16x256xf32> -> vector<16x256xf32>
    %c0_15 = arith.constant 0 : index
    %c0_16 = arith.constant 0 : index
    %17 = vector.load %arg7[%c0_15, %c0_16] : memref<16x1xf32, #tpu.memory_space<vmem>>, vector<16x1xf32>
    %18 = vector.broadcast %17 : vector<16x1xf32> to vector<16x256xf32>
    %19 = arith.addf %16, %18 : vector<16x256xf32>
    %cst_17 = arith.constant 0.000000e+00 : f32
    %20 = vector.broadcast %cst_17 : f32 to vector<16x256xf32>
    %21 = arith.maximumf %19, %20 : vector<16x256xf32>
    %c0_18 = arith.constant 0 : index
    %c0_19 = arith.constant 0 : index
    %22 = vector.load %arg8[%c0_18, %c0_19] : memref<16x16xf32, #tpu.memory_space<vmem>>, vector<16x16xf32>
    %cst_20 = arith.constant dense<0.000000e+00> : vector<16x256xf32>
    %23 = tpu.matmul %22, %21, %cst_20 {dimension_numbers = #tpu.dot_dimension_numbers<[1], [0], [0], [1], [0, 0, 1, 1], [], []>} : vector<16x16xf32>, vector<16x256xf32>, vector<16x256xf32> -> vector<16x256xf32>
    %c0_21 = arith.constant 0 : index
    %c0_22 = arith.constant 0 : index
    %24 = vector.load %arg9[%c0_21, %c0_22] : memref<16x1xf32, #tpu.memory_space<vmem>>, vector<16x1xf32>
    %25 = vector.broadcast %24 : vector<16x1xf32> to vector<16x256xf32>
    %26 = arith.addf %23, %25 : vector<16x256xf32>
    %cst_23 = arith.constant 0.000000e+00 : f32
    %27 = vector.broadcast %cst_23 : f32 to vector<16x256xf32>
    %28 = arith.maximumf %26, %27 : vector<16x256xf32>
    %c0_24 = arith.constant 0 : index
    %c0_25 = arith.constant 0 : index
    %29 = vector.load %arg10[%c0_24, %c0_25] : memref<16x1xf32, #tpu.memory_space<vmem>>, vector<16x1xf32>
    %30 = vector.broadcast %29 : vector<16x1xf32> to vector<16x256xf32>
    %31 = arith.mulf %30, %28 : vector<16x256xf32>
    %cst_26 = arith.constant dense<0.000000e+00> : vector<256xf32>
    %32 = vector.multi_reduction <add>, %31, %cst_26 [0] : vector<16x256xf32> to vector<256xf32>
    %33 = vector.shape_cast %32 : vector<256xf32> to vector<1x256xf32>
    %c0_27 = arith.constant 0 : index
    %c0_28 = arith.constant 0 : index
    %34 = vector.load %arg11[%c0_27, %c0_28] : memref<1x1xf32, #tpu.memory_space<vmem>>, vector<1x1xf32>
    %35 = vector.broadcast %34 : vector<1x1xf32> to vector<1x256xf32>
    %36 = arith.addf %33, %35 : vector<1x256xf32>
    %c0_29 = arith.constant 0 : index
    %c0_30 = arith.constant 0 : index
    %37 = vector.load %arg12[%c0_29, %c0_30] : memref<1x256xf32, #tpu.memory_space<vmem>>, vector<1x256xf32>
    tpu.vector_store %arg12[%c0_29, %c0_30], %36 {strides = array<i32>} : memref<1x256xf32, #tpu.memory_space<vmem>>, vector<1x256xf32>,
    return
  }
  func.func @transform_0(%arg0: i32) -> (i32, i32) {
    %c0_i32 = arith.constant 0 : i32
    %c0_i32_0 = arith.constant 0 : i32
    return %arg0, %c0_i32 : i32, i32
  }
  func.func @transform_1(%arg0: i32) -> (i32, i32) {
    %c0_i32 = arith.constant 0 : i32
    %c0_i32_0 = arith.constant 0 : i32
    %c0_i32_1 = arith.constant 0 : i32
    return %c0_i32, %c0_i32_0 : i32, i32
  }
  func.func @transform_2(%arg0: i32) -> (i32, i32) {
    %c0_i32 = arith.constant 0 : i32
    %c0_i32_0 = arith.constant 0 : i32
    %c0_i32_1 = arith.constant 0 : i32
    return %c0_i32, %c0_i32_0 : i32, i32
  }
  func.func @transform_3(%arg0: i32) -> (i32, i32) {
    %c0_i32 = arith.constant 0 : i32
    %c0_i32_0 = arith.constant 0 : i32
    %c0_i32_1 = arith.constant 0 : i32
    return %c0_i32, %c0_i32_0 : i32, i32
  }
  func.func @transform_4(%arg0: i32) -> (i32, i32) {
    %c0_i32 = arith.constant 0 : i32
    %c0_i32_0 = arith.constant 0 : i32
    %c0_i32_1 = arith.constant 0 : i32
    return %c0_i32, %c0_i32_0 : i32, i32
  }
  func.func @transform_5(%arg0: i32) -> (i32, i32) {
    %c0_i32 = arith.constant 0 : i32
    %c0_i32_0 = arith.constant 0 : i32
    %c0_i32_1 = arith.constant 0 : i32
    return %c0_i32, %c0_i32_0 : i32, i32
  }
  func.func @transform_6(%arg0: i32) -> (i32, i32) {
    %c0_i32 = arith.constant 0 : i32
    %c0_i32_0 = arith.constant 0 : i32
    %c0_i32_1 = arith.constant 0 : i32
    return %c0_i32, %c0_i32_0 : i32, i32
  }
  func.func @transform_7(%arg0: i32) -> (i32, i32) {
    %c0_i32 = arith.constant 0 : i32
    %c0_i32_0 = arith.constant 0 : i32
    %c0_i32_1 = arith.constant 0 : i32
    return %c0_i32, %c0_i32_0 : i32, i32
  }
  func.func @transform_8(%arg0: i32) -> (i32, i32) {
    %c0_i32 = arith.constant 0 : i32
    %c0_i32_0 = arith.constant 0 : i32
    %c0_i32_1 = arith.constant 0 : i32
    return %c0_i32, %c0_i32_0 : i32, i32
  }
  func.func @transform_9(%arg0: i32) -> (i32, i32) {
    %c0_i32 = arith.constant 0 : i32
    %c0_i32_0 = arith.constant 0 : i32
    %c0_i32_1 = arith.constant 0 : i32
    return %c0_i32, %c0_i32_0 : i32, i32
  }
  func.func @transform_10(%arg0: i32) -> (i32, i32) {
    %c0_i32 = arith.constant 0 : i32
    %c0_i32_0 = arith.constant 0 : i32
    %c0_i32_1 = arith.constant 0 : i32
    return %c0_i32, %c0_i32_0 : i32, i32
  }
  func.func @transform_11(%arg0: i32) -> (i32, i32) {
    %c0_i32 = arith.constant 0 : i32
    %c0_i32_0 = arith.constant 0 : i32
    return %c0_i32, %arg0 : i32, i32
  }
}

</mosaic_0001>

<llo_original>
// kernel: tpu_custom_call.1
$region0: #{tpu_custom_call.1}
  #allocation0 [shape = 'u32[]', space=smem, size = 0x4, offset = 0x4, fixed_abs, tag = 'smem constant byte address 0x4 - core index']
  #allocation1 [shape = 'u32[144,128]{1,0:T(1,128)}', space=vmem, size = 0x12000, scoped, tag = 'internal scratch']
  #allocation2 [shape = 'f32[1,1]{1,0:T(1,128)S(1)}', space=vmem, size = 0x200, scoped, tag = 'scoped memory for tpu_custom_call.1']
  %s0 = inlined_call_operand.vmem [shape: f32[512,32], index: 0, kind: input, shape index: {}]
  %s1 = inlined_call_operand.vmem [shape: f32[32,32], index: 1, kind: input, shape index: {}]
  %s2 = inlined_call_operand.vmem [shape: f32[32,1], index: 2, kind: input, shape index: {}]
  %s3 = inlined_call_operand.vmem [shape: f32[16,32], index: 3, kind: input, shape index: {}]
  %s4 = inlined_call_operand.vmem [shape: f32[16,1], index: 4, kind: input, shape index: {}]
  %s5 = inlined_call_operand.vmem [shape: f32[16,16], index: 5, kind: input, shape index: {}]
  %s6 = inlined_call_operand.vmem [shape: f32[16,1], index: 6, kind: input, shape index: {}]
  %s7 = inlined_call_operand.vmem [shape: f32[16,16], index: 7, kind: input, shape index: {}]
  %s8 = inlined_call_operand.vmem [shape: f32[16,1], index: 8, kind: input, shape index: {}]
  %s9 = inlined_call_operand.vmem [shape: f32[16,1], index: 9, kind: input, shape index: {}]
  %s10 = inlined_call_operand.<no memory space> [shape: f32[1,1], index: 10, kind: input, shape index: {}]
  %s11 = inlined_call_operand.hbm [shape: f32[1,512], index: 11, kind: output, shape index: {}]
  %s12 = sld [smem:[#allocation0]]
  $region77: #{tpu_custom_call.1} parent=0
    _
  %s14 = ssub.s32 1, %s12
  %s15 = scalar_select 0, %s14, %s12
  %v16 = vstv %s10
  %17 = vst [vmem:[#allocation2] sm:$0x1] %v16
  $region1: #{tpu_custom_call.1} parent=0
    #allocation3 [shape = 'u8[2048]{0}', space=vmem, size = 0x800, scoped, tag = 'output window, operand 0']
    #allocation4 [shape = 's32[2]{0}', space=sflag, size = 0x8, scoped, tag = 'scoped memory for tpu_custom_call.1']
    %18 = vsyncpa [#allocation4], 0
    %s19 = scalar_lea.sflag [#allocation4], 1
    %20 = vsyncpa %s19, 0
    loop: start=0, step=1, limit=4
    $region2: #{tpu_custom_call.1} parent=1 // loop_pre_header
      _
    $region3: #{tpu_custom_call.1} parent=1 // loop_header
      %s22 = sphi 0, %s26
      %p23 = scmp.ge.s32.totalorder %s22, 4
      %s32 = sphi 0, %s34
      %s35 = sphi 0, %s32
      %s36 = sphi 0, %s35
      %s52 = sphi 0, %s36
      %s56 = sphi 0, %s56
      %s58 = sphi 0, %s56
      %s59 = sphi 0, %s58
      %s73 = sphi 0, %s59
      %s77 = sphi 0, %s77
      %s79 = sphi 0, %s77
      %s80 = sphi 0, %s79
      %s94 = sphi 0, %s80
      %s98 = sphi 0, %s98
      %s100 = sphi 0, %s98
      %s101 = sphi 0, %s100
      %s115 = sphi 0, %s101
      %s119 = sphi 0, %s119
      %s121 = sphi 0, %s119
      %s122 = sphi 0, %s121
      %s136 = sphi 0, %s122
      %s140 = sphi 0, %s140
      %s142 = sphi 0, %s140
      %s143 = sphi 0, %s142
      %s157 = sphi 0, %s143
      %s161 = sphi 0, %s161
      %s163 = sphi 0, %s161
      %s164 = sphi 0, %s163
      %s178 = sphi 0, %s164
      %s182 = sphi 0, %s182
      %s184 = sphi 0, %s182
      %s185 = sphi 0, %s184
      %s199 = sphi 0, %s185
      %s203 = sphi 0, %s203
      %s205 = sphi 0, %s203
      %s206 = sphi 0, %s205
      %s220 = sphi 0, %s206
      %s224 = sphi 0, %s224
      %s226 = sphi 0, %s224
      %s227 = sphi 0, %s226
      %s241 = sphi 0, %s227
      %s245 = sphi 0, %s245
      %s247 = sphi 0, %s245
      %s248 = sphi 0, %s247
      %s262 = sphi 0, %s248
      %s268 = sphi 0, %s270
      %s271 = sphi 0, %s268
      %s272 = sphi 0, %s271
      %s288 = sphi 0, %s272
    $region4: #{tpu_custom_call.1} parent=1 // loop_header_branch
      %25 = sbr.rel (%p23) target = $region8
    $region5: #{tpu_custom_call.1} parent=1 // loop_body
      %s27 = ssub.s32 %s22, 1
      %s28 = ssub.s32 %s22, 2
      %s29 = sadd.s32 %s22, 1
      %s30 = ssub.s32 %s22, %s29
      %p31 = scmp.eq.s32.totalorder %s30, 0
      %s33 = sadd.s32 %s32, 1
      %s34 = scalar_select %p31, %s32, %s33
      %p37 = pneg %p31
      %p38 = scmp.eq.s32.totalorder %s22, 1
      %p39 = por %p37, %p38
      %p40 = scmp.ne.s32.totalorder %s32, %s35
      %p41 = scmp.eq.s32.totalorder %s22, 0
      %p42 = por %p40, %p41
      %p43 = scmp.ne.s32.totalorder %s32, %s35
      %p44 = scmp.eq.s32.totalorder %s27, 1
      %p45 = por %p43, %p44
      %p46 = scmp.ne.s32.totalorder %s35, %s36
      %p47 = scmp.eq.s32.totalorder %s27, 0
      %p48 = por %p46, %p47
      %p49 = scmp.ne.s32.totalorder %s35, %s36
      %p50 = scmp.eq.s32.totalorder %s28, 1
      %p51 = por %p49, %p50
      %p53 = scmp.ne.s32.totalorder %s36, %s52
      %p54 = scmp.eq.s32.totalorder %s28, 0
      %p55 = por %p53, %p54
      %s57 = sadd.s32 %s56, 1
      %p60 = scmp.eq.s32.totalorder %s22, 1
      %p61 = scmp.ne.s32.totalorder %s56, %s58
      %p62 = scmp.eq.s32.totalorder %s22, 0
      %p63 = por %p61, %p62
      %p64 = scmp.ne.s32.totalorder %s56, %s58
      %p65 = scmp.eq.s32.totalorder %s27, 1
      %p66 = por %p64, %p65
      %p67 = scmp.ne.s32.totalorder %s58, %s59
      %p68 = scmp.eq.s32.totalorder %s27, 0
      %p69 = por %p67, %p68
      %p70 = scmp.ne.s32.totalorder %s58, %s59
      %p71 = scmp.eq.s32.totalorder %s28, 1
      %p72 = por %p70, %p71
      %p74 = scmp.ne.s32.totalorder %s59, %s73
      %p75 = scmp.eq.s32.totalorder %s28, 0
      %p76 = por %p74, %p75
      %s78 = sadd.s32 %s77, 1
      %p81 = scmp.eq.s32.totalorder %s22, 1
      %p82 = scmp.ne.s32.totalorder %s77, %s79
      %p83 = scmp.eq.s32.totalorder %s22, 0
      %p84 = por %p82, %p83
      %p85 = scmp.ne.s32.totalorder %s77, %s79
      %p86 = scmp.eq.s32.totalorder %s27, 1
      %p87 = por %p85, %p86
      %p88 = scmp.ne.s32.totalorder %s79, %s80
      %p89 = scmp.eq.s32.totalorder %s27, 0
      %p90 = por %p88, %p89
      %p91 = scmp.ne.s32.totalorder %s79, %s80
      %p92 = scmp.eq.s32.totalorder %s28, 1
      %p93 = por %p91, %p92
      %p95 = scmp.ne.s32.totalorder %s80, %s94
      %p96 = scmp.eq.s32.totalorder %s28, 0
      %p97 = por %p95, %p96
      %s99 = sadd.s32 %s98, 1
      %p102 = scmp.eq.s32.totalorder %s22, 1
      %p103 = scmp.ne.s32.totalorder %s98, %s100
      %p104 = scmp.eq.s32.totalorder %s22, 0
      %p105 = por %p103, %p104
      %p106 = scmp.ne.s32.totalorder %s98, %s100
      %p107 = scmp.eq.s32.totalorder %s27, 1
      %p108 = por %p106, %p107
      %p109 = scmp.ne.s32.totalorder %s100, %s101
      %p110 = scmp.eq.s32.totalorder %s27, 0
      %p111 = por %p109, %p110
      %p112 = scmp.ne.s32.totalorder %s100, %s101
      %p113 = scmp.eq.s32.totalorder %s28, 1
      %p114 = por %p112, %p113
      %p116 = scmp.ne.s32.totalorder %s101, %s115
      %p117 = scmp.eq.s32.totalorder %s28, 0
      %p118 = por %p116, %p117
      %s120 = sadd.s32 %s119, 1
      %p123 = scmp.eq.s32.totalorder %s22, 1
      %p124 = scmp.ne.s32.totalorder %s119, %s121
      %p125 = scmp.eq.s32.totalorder %s22, 0
      %p126 = por %p124, %p125
      %p127 = scmp.ne.s32.totalorder %s119, %s121
      %p128 = scmp.eq.s32.totalorder %s27, 1
      %p129 = por %p127, %p128
      %p130 = scmp.ne.s32.totalorder %s121, %s122
      %p131 = scmp.eq.s32.totalorder %s27, 0
      %p132 = por %p130, %p131
      %p133 = scmp.ne.s32.totalorder %s121, %s122
      %p134 = scmp.eq.s32.totalorder %s28, 1
      %p135 = por %p133, %p134
      %p137 = scmp.ne.s32.totalorder %s122, %s136
      %p138 = scmp.eq.s32.totalorder %s28, 0
      %p139 = por %p137, %p138
      %s141 = sadd.s32 %s140, 1
      %p144 = scmp.eq.s32.totalorder %s22, 1
      %p145 = scmp.ne.s32.totalorder %s140, %s142
      %p146 = scmp.eq.s32.totalorder %s22, 0
      %p147 = por %p145, %p146
      %p148 = scmp.ne.s32.totalorder %s140, %s142
      %p149 = scmp.eq.s32.totalorder %s27, 1
      %p150 = por %p148, %p149
      %p151 = scmp.ne.s32.totalorder %s142, %s143
      %p152 = scmp.eq.s32.totalorder %s27, 0
      %p153 = por %p151, %p152
      %p154 = scmp.ne.s32.totalorder %s142, %s143
      %p155 = scmp.eq.s32.totalorder %s28, 1
      %p156 = por %p154, %p155
      %p158 = scmp.ne.s32.totalorder %s143, %s157
      %p159 = scmp.eq.s32.totalorder %s28, 0
      %p160 = por %p158, %p159
      %s162 = sadd.s32 %s161, 1
      %p165 = scmp.eq.s32.totalorder %s22, 1
      %p166 = scmp.ne.s32.totalorder %s161, %s163
      %p167 = scmp.eq.s32.totalorder %s22, 0
      %p168 = por %p166, %p167
      %p169 = scmp.ne.s32.totalorder %s161, %s163
      %p170 = scmp.eq.s32.totalorder %s27, 1
      %p171 = por %p169, %p170
      %p172 = scmp.ne.s32.totalorder %s163, %s164
      %p173 = scmp.eq.s32.totalorder %s27, 0
      %p174 = por %p172, %p173
      %p175 = scmp.ne.s32.totalorder %s163, %s164
      %p176 = scmp.eq.s32.totalorder %s28, 1
      %p177 = por %p175, %p176
      %p179 = scmp.ne.s32.totalorder %s164, %s178
      %p180 = scmp.eq.s32.totalorder %s28, 0
      %p181 = por %p179, %p180
      %s183 = sadd.s32 %s182, 1
      %p186 = scmp.eq.s32.totalorder %s22, 1
      %p187 = scmp.ne.s32.totalorder %s182, %s184
      %p188 = scmp.eq.s32.totalorder %s22, 0
      %p189 = por %p187, %p188
      %p190 = scmp.ne.s32.totalorder %s182, %s184
      %p191 = scmp.eq.s32.totalorder %s27, 1
      %p192 = por %p190, %p191
      %p193 = scmp.ne.s32.totalorder %s184, %s185
      %p194 = scmp.eq.s32.totalorder %s27, 0
      %p195 = por %p193, %p194
      %p196 = scmp.ne.s32.totalorder %s184, %s185
      %p197 = scmp.eq.s32.totalorder %s28, 1
      %p198 = por %p196, %p197
      %p200 = scmp.ne.s32.totalorder %s185, %s199
      %p201 = scmp.eq.s32.totalorder %s28, 0
      %p202 = por %p200, %p201
      %s204 = sadd.s32 %s203, 1
      %p207 = scmp.eq.s32.totalorder %s22, 1
      %p208 = scmp.ne.s32.totalorder %s203, %s205
      %p209 = scmp.eq.s32.totalorder %s22, 0
      %p210 = por %p208, %p209
      %p211 = scmp.ne.s32.totalorder %s203, %s205
      %p212 = scmp.eq.s32.totalorder %s27, 1
      %p213 = por %p211, %p212
      %p214 = scmp.ne.s32.totalorder %s205, %s206
      %p215 = scmp.eq.s32.totalorder %s27, 0
      %p216 = por %p214, %p215
      %p217 = scmp.ne.s32.totalorder %s205, %s206
      %p218 = scmp.eq.s32.totalorder %s28, 1
      %p219 = por %p217, %p218
      %p221 = scmp.ne.s32.totalorder %s206, %s220
      %p222 = scmp.eq.s32.totalorder %s28, 0
      %p223 = por %p221, %p222
      %s225 = sadd.s32 %s224, 1
      %p228 = scmp.eq.s32.totalorder %s22, 1
      %p229 = scmp.ne.s32.totalorder %s224, %s226
      %p230 = scmp.eq.s32.totalorder %s22, 0
      %p231 = por %p229, %p230
      %p232 = scmp.ne.s32.totalorder %s224, %s226
      %p233 = scmp.eq.s32.totalorder %s27, 1
      %p234 = por %p232, %p233
      %p235 = scmp.ne.s32.totalorder %s226, %s227
      %p236 = scmp.eq.s32.totalorder %s27, 0
      %p237 = por %p235, %p236
      %p238 = scmp.ne.s32.totalorder %s226, %s227
      %p239 = scmp.eq.s32.totalorder %s28, 1
      %p240 = por %p238, %p239
      %p242 = scmp.ne.s32.totalorder %s227, %s241
      %p243 = scmp.eq.s32.totalorder %s28, 0
      %p244 = por %p242, %p243
      %s246 = sadd.s32 %s245, 1
      %p249 = scmp.eq.s32.totalorder %s22, 1
      %p250 = scmp.ne.s32.totalorder %s245, %s247
      %p251 = scmp.eq.s32.totalorder %s22, 0
      %p252 = por %p250, %p251
      %p253 = scmp.ne.s32.totalorder %s245, %s247
      %p254 = scmp.eq.s32.totalorder %s27, 1
      %p255 = por %p253, %p254
      %p256 = scmp.ne.s32.totalorder %s247, %s248
      %p257 = scmp.eq.s32.totalorder %s27, 0
      %p258 = por %p256, %p257
      %p259 = scmp.ne.s32.totalorder %s247, %s248
      %p260 = scmp.eq.s32.totalorder %s28, 1
      %p261 = por %p259, %p260
      %p263 = scmp.ne.s32.totalorder %s248, %s262
      %p264 = scmp.eq.s32.totalorder %s28, 0
      %p265 = por %p263, %p264
      %s266 = ssub.s32 %s22, %s29
      %p267 = scmp.eq.s32.totalorder %s266, 0
      %s269 = sadd.s32 %s268, 1
      %s270 = scalar_select %p267, %s268, %s269
      %p273 = pneg %p267
      %p274 = scmp.eq.s32.totalorder %s22, 1
      %p275 = por %p273, %p274
      %p276 = scmp.ne.s32.totalorder %s268, %s271
      %p277 = scmp.eq.s32.totalorder %s22, 0
      %p278 = por %p276, %p277
      %p279 = scmp.ne.s32.totalorder %s268, %s271
      %p280 = scmp.eq.s32.totalorder %s27, 1
      %p281 = por %p279, %p280
      %p282 = scmp.ne.s32.totalorder %s271, %s272
      %p283 = scmp.eq.s32.totalorder %s27, 0
      %p284 = por %p282, %p283
      %p285 = scmp.ne.s32.totalorder %s271, %s272
      %p286 = scmp.eq.s32.totalorder %s28, 1
      %p287 = por %p285, %p286
      %p289 = scmp.ne.s32.totalorder %s272, %s288
      %p290 = scmp.eq.s32.totalorder %s28, 0
      %p291 = por %p289, %p290
      %p292 = scmp.le.s32.totalorder 1, %s22
      %p293 = scmp.lt.s32.totalorder %s22, 3
      %p294 = pnand %p292, %p293
      %p295 = pneg %p294
      // Predicated region
      $region9: #{tpu_custom_call.1} parent=5 // pred_check
        _
      $region10: #{tpu_custom_call.1} parent=5 // pred_check_branch
        %297 = sbr.rel (%p294) target = $region12
      $region11: #{tpu_custom_call.1} parent=5 // pred_region
        %s298 = ssub.s32 %s22, 1
        // Predicated region
        $region13: #{tpu_custom_call.1} parent=11 // pred_check
          %p299 = pneg %p69
        $region14: #{tpu_custom_call.1} parent=11 // pred_check_branch
          %301 = sbr.rel (%p299) target = $region16
        $region15: #{tpu_custom_call.1} parent=11 // pred_region
          _
        $region16: #{tpu_custom_call.1} parent=11 // pred_fallthru
          _
        // Predicated region
        $region17: #{tpu_custom_call.1} parent=11 // pred_check
          %p302 = pneg %p90
        $region18: #{tpu_custom_call.1} parent=11 // pred_check_branch
          %304 = sbr.rel (%p302) target = $region20
        $region19: #{tpu_custom_call.1} parent=11 // pred_region
          _
        $region20: #{tpu_custom_call.1} parent=11 // pred_fallthru
          _
        // Predicated region
        $region21: #{tpu_custom_call.1} parent=11 // pred_check
          %p305 = pneg %p111
        $region22: #{tpu_custom_call.1} parent=11 // pred_check_branch
          %307 = sbr.rel (%p305) target = $region24
        $region23: #{tpu_custom_call.1} parent=11 // pred_region
          _
        $region24: #{tpu_custom_call.1} parent=11 // pred_fallthru
          _
        // Predicated region
        $region25: #{tpu_custom_call.1} parent=11 // pred_check
          %p308 = pneg %p132
        $region26: #{tpu_custom_call.1} parent=11 // pred_check_branch
          %310 = sbr.rel (%p308) target = $region28
        $region27: #{tpu_custom_call.1} parent=11 // pred_region
          _
        $region28: #{tpu_custom_call.1} parent=11 // pred_fallthru
          _
        // Predicated region
        $region29: #{tpu_custom_call.1} parent=11 // pred_check
          %p311 = pneg %p153
        $region30: #{tpu_custom_call.1} parent=11 // pred_check_branch
          %313 = sbr.rel (%p311) target = $region32
        $region31: #{tpu_custom_call.1} parent=11 // pred_region
          _
        $region32: #{tpu_custom_call.1} parent=11 // pred_fallthru
          _
        // Predicated region
        $region33: #{tpu_custom_call.1} parent=11 // pred_check
          %p314 = pneg %p174
        $region34: #{tpu_custom_call.1} parent=11 // pred_check_branch
          %316 = sbr.rel (%p314) target = $region36
        $region35: #{tpu_custom_call.1} parent=11 // pred_region
          _
        $region36: #{tpu_custom_call.1} parent=11 // pred_fallthru
          _
        // Predicated region
        $region37: #{tpu_custom_call.1} parent=11 // pred_check
          %p317 = pneg %p195
        $region38: #{tpu_custom_call.1} parent=11 // pred_check_branch
          %319 = sbr.rel (%p317) target = $region40
        $region39: #{tpu_custom_call.1} parent=11 // pred_region
          _
        $region40: #{tpu_custom_call.1} parent=11 // pred_fallthru
          _
        // Predicated region
        $region41: #{tpu_custom_call.1} parent=11 // pred_check
          %p320 = pneg %p216
        $region42: #{tpu_custom_call.1} parent=11 // pred_check_branch
          %322 = sbr.rel (%p320) target = $region44
        $region43: #{tpu_custom_call.1} parent=11 // pred_region
          _
        $region44: #{tpu_custom_call.1} parent=11 // pred_fallthru
          _
        // Predicated region
        $region45: #{tpu_custom_call.1} parent=11 // pred_check
          %p323 = pneg %p237
        $region46: #{tpu_custom_call.1} parent=11 // pred_check_branch
          %325 = sbr.rel (%p323) target = $region48
        $region47: #{tpu_custom_call.1} parent=11 // pred_region
          _
        $region48: #{tpu_custom_call.1} parent=11 // pred_fallthru
          _
        // Predicated region
        $region49: #{tpu_custom_call.1} parent=11 // pred_check
          %p326 = pneg %p258
        $region50: #{tpu_custom_call.1} parent=11 // pred_check_branch
          %328 = sbr.rel (%p326) target = $region52
        $region51: #{tpu_custom_call.1} parent=11 // pred_region
          _
        $region52: #{tpu_custom_call.1} parent=11 // pred_fallthru
          _
      $region12: #{tpu_custom_call.1} parent=5 // pred_fallthru
        _
      %p329 = scmp.lt.s32.totalorder %s22, 2
      // Predicated region
      $region53: #{tpu_custom_call.1} parent=5 // pred_check
        %p330 = pneg %p329
      $region54: #{tpu_custom_call.1} parent=5 // pred_check_branch
        %332 = sbr.rel (%p330) target = $region56
      $region55: #{tpu_custom_call.1} parent=5 // pred_region
        // Predicated region
        $region57: #{tpu_custom_call.1} parent=55 // pred_check
          %p333 = pneg %p42
        $region58: #{tpu_custom_call.1} parent=55 // pred_check_branch
          %335 = sbr.rel (%p333) target = $region60
        $region59: #{tpu_custom_call.1} parent=55 // pred_region
          %s336 = smul.u32 32, %s22
          %p337 = scmp.lt.s32.totalorder %s336, 63
          %s338 = scalar_select %p337, %s336, 63
          %s339 = smul.addr %s338, 8
          %s340 = scalar_lea.vmem %s0, %s339
          %s341 = smul.u32 32, %s22
        $region60: #{tpu_custom_call.1} parent=55 // pred_fallthru
          _
      $region56: #{tpu_custom_call.1} parent=5 // pred_fallthru
        _
      %p342 = scmp.le.s32.totalorder 1, %s22
      %p343 = scmp.lt.s32.totalorder %s22, 3
      %p344 = pnand %p342, %p343
      %p345 = pneg %p344
      // Predicated region
      $region61: #{tpu_custom_call.1} parent=5 // pred_check
        _
      $region62: #{tpu_custom_call.1} parent=5 // pred_check_branch
        %347 = sbr.rel (%p344) target = $region64
      $region63: #{tpu_custom_call.1} parent=5 // pred_region
        %s348 = ssub.s32 %s22, 1
        %s349 = smul.u32 32, %s27
        %p350 = scmp.lt.s32.totalorder %s349, 63
        %s351 = scalar_select %p350, %s349, 63
        %s352 = smul.addr %s351, 8
        %s353 = scalar_lea.vmem %s0, %s352
        %p354 = pneg %p48
        %p355 = pneg %p45
        %p356 = pneg %p69
        %p357 = pneg %p66
        %p358 = pneg %p90
        %p359 = pneg %p87
        %p360 = pneg %p111
        %p361 = pneg %p108
        %p362 = pneg %p132
        %p363 = pneg %p129
        %p364 = pneg %p153
        %p365 = pneg %p150
        %p366 = pneg %p174
        %p367 = pneg %p171
        %p368 = pneg %p195
        %p369 = pneg %p192
        %p370 = pneg %p216
        %p371 = pneg %p213
        %p372 = pneg %p237
        %p373 = pneg %p234
        %p374 = pneg %p258
        %p375 = pneg %p255
        %p376 = pneg %p284
        %p377 = pneg %p281
        %s378 = sand.u32 %s271, 1
        %s379 = scalar_lea.sflag [#allocation4], %s378
        %s380 = sand.u32 %s271, 1
        %s381 = smul.addr %s380, 2
        %s382 = scalar_lea.vmem [#allocation3], %s381
        %s383 = smul.u32 32, %s27
        %p384 = scmp.lt.s32.totalorder %s383, 63
        %s385 = scalar_select %p384, %s383, 63
        %s386 = smul.addr %s385, 8
        %s387 = scalar_lea.vmem %s0, %s386
        %s388 = smul.u32 32, %s27
        %s389 = smul.u32 2, %s27
        %v390 = vld [vmem:[%s387] sm:$0xff]
        %v391 = vld [vmem:[%s387 + $0x8] sm:$0xff]
        %v392 = vld [vmem:[%s387 + $0x10] sm:$0xff]
        %v393 = vld [vmem:[%s387 + $0x18] sm:$0xff]
        %v394 = vld [vmem:[%s387 + $0x20] sm:$0xff]
        %v395 = vld [vmem:[%s387 + $0x28] sm:$0xff]
        %v396 = vld [vmem:[%s387 + $0x30] sm:$0xff]
        %v397 = vld [vmem:[%s387 + $0x38] sm:$0xff]
        %v398 = vld [vmem:[%s387 + $0x40] sm:$0xff]
        %v399 = vld [vmem:[%s387 + $0x48] sm:$0xff]
        %v400 = vld [vmem:[%s387 + $0x50] sm:$0xff]
        %v401 = vld [vmem:[%s387 + $0x58] sm:$0xff]
        %v402 = vld [vmem:[%s387 + $0x60] sm:$0xff]
        %v403 = vld [vmem:[%s387 + $0x68] sm:$0xff]
        %v404 = vld [vmem:[%s387 + $0x70] sm:$0xff]
        %v405 = vld [vmem:[%s387 + $0x78] sm:$0xff]
        %v406 = vld [vmem:[%s387 + $0x80] sm:$0xff]
        %v407 = vld [vmem:[%s387 + $0x88] sm:$0xff]
        %v408 = vld [vmem:[%s387 + $0x90] sm:$0xff]
        %v409 = vld [vmem:[%s387 + $0x98] sm:$0xff]
        %v410 = vld [vmem:[%s387 + $0xa0] sm:$0xff]
        %v411 = vld [vmem:[%s387 + $0xa8] sm:$0xff]
        %v412 = vld [vmem:[%s387 + $0xb0] sm:$0xff]
        %v413 = vld [vmem:[%s387 + $0xb8] sm:$0xff]
        %v414 = vld [vmem:[%s387 + $0xc0] sm:$0xff]
        %v415 = vld [vmem:[%s387 + $0xc8] sm:$0xff]
        %v416 = vld [vmem:[%s387 + $0xd0] sm:$0xff]
        %v417 = vld [vmem:[%s387 + $0xd8] sm:$0xff]
        %v418 = vld [vmem:[%s387 + $0xe0] sm:$0xff]
        %v419 = vld [vmem:[%s387 + $0xe8] sm:$0xff]
        %v420 = vld [vmem:[%s387 + $0xf0] sm:$0xff]
        %v421 = vld [vmem:[%s387 + $0xf8] sm:$0xff]
        %v422 = vld [vmem:[%s1] sm:$0xff]
        %v423 = vld [vmem:[%s1 + $0x8] sm:$0xff]
        %v424 = vld [vmem:[%s1 + $0x10] sm:$0xff]
        %v425 = vld [vmem:[%s1 + $0x18] sm:$0xff]
        %v426 = vld [vmem:[%s2] sm:$0xff]
        %v427 = vld [vmem:[%s2 + $0x8] sm:$0xff]
        %v428 = vld [vmem:[%s2 + $0x10] sm:$0xff]
        %v429 = vld [vmem:[%s2 + $0x18] sm:$0xff]
        %431 = vset.pattern.permute.xlu0 0
        %432 = vperm.xlu0 %431, %v426
        %v433 = vpop.permute.xlu0 %432
        %436 = vset.pattern.permute.xlu0 0
        %437 = vperm.xlu0 %436, %v427
        %v438 = vpop.permute.xlu0 %437
        %441 = vset.pattern.permute.xlu0 0
        %442 = vperm.xlu0 %441, %v428
        %v443 = vpop.permute.xlu0 %442
        %446 = vset.pattern.permute.xlu0 0
        %447 = vperm.xlu0 %446, %v429
        %v448 = vpop.permute.xlu0 %447
        %vm450 = vcmask 261120
        %v452 = vsel %vm450, %v422, 0
        %v455 = vsel %vm450, %v423, 0
        %v458 = vsel %vm450, %v424, 0
        %v461 = vsel %vm450, %v425, 0
        %v464 = vsel %vm450, %v390, 0
        %v467 = vsel %vm450, %v391, 0
        %v470 = vsel %vm450, %v392, 0
        %v473 = vsel %vm450, %v393, 0
        %v476 = vsel %vm450, %v394, 0
        %v479 = vsel %vm450, %v395, 0
        %v482 = vsel %vm450, %v396, 0
        %v485 = vsel %vm450, %v397, 0
        %v488 = vsel %vm450, %v398, 0
        %v491 = vsel %vm450, %v399, 0
        %v494 = vsel %vm450, %v400, 0
        %v497 = vsel %vm450, %v401, 0
        %v500 = vsel %vm450, %v402, 0
        %v503 = vsel %vm450, %v403, 0
        %v506 = vsel %vm450, %v404, 0
        %v509 = vsel %vm450, %v405, 0
        %v512 = vsel %vm450, %v406, 0
        %v515 = vsel %vm450, %v407, 0
        %v518 = vsel %vm450, %v408, 0
        %v521 = vsel %vm450, %v409, 0
        %v524 = vsel %vm450, %v410, 0
        %v527 = vsel %vm450, %v411, 0
        %v530 = vsel %vm450, %v412, 0
        %v533 = vsel %vm450, %v413, 0
        %v536 = vsel %vm450, %v414, 0
        %v539 = vsel %vm450, %v415, 0
        %v542 = vsel %vm450, %v416, 0
        %v545 = vsel %vm450, %v417, 0
        %v548 = vsel %vm450, %v418, 0
        %v551 = vsel %vm450, %v419, 0
        %v554 = vsel %vm450, %v420, 0
        %v557 = vsel %vm450, %v421, 0
        %559 = vmatprep.subr.mxu0 0.0
        %560 = vmatpush1.xpose.msra.mxu0 %v464
        %561 = vmatprep.subr.mxu0 0.0
        %562 = vmatpush1.xpose.msra.mxu0 %v467
        %563 = vmatprep.subr.mxu0 0.0
        %564 = vmatpush1.xpose.msra.mxu0 %v470
        %565 = vmatprep.subr.mxu0 0.0
        %566 = vmatpush1.xpose.msra.mxu0 %v473
        %567 = vmatprep.subr.mxu0 0.0
        %568 = vmatpush1.xpose.msra.mxu0 %v476
        %569 = vmatprep.subr.mxu0 0.0
        %570 = vmatpush1.xpose.msra.mxu0 %v479
        %571 = vmatprep.subr.mxu0 0.0
        %572 = vmatpush1.xpose.msra.mxu0 %v482
        %573 = vmatprep.subr.mxu0 0.0
        %574 = vmatpush1.xpose.msra.mxu0 %v485
        %575 = vmatprep.subr.mxu0 0.0
        %576 = vmatpush1.xpose.msra.mxu0 %v488
        %577 = vmatprep.subr.mxu0 0.0
        %578 = vmatpush1.xpose.msra.mxu0 %v491
        %579 = vmatprep.subr.mxu0 0.0
        %580 = vmatpush1.xpose.msra.mxu0 %v494
        %581 = vmatprep.subr.mxu0 0.0
        %582 = vmatpush1.xpose.msra.mxu0 %v497
        %583 = vmatprep.subr.mxu0 0.0
        %584 = vmatpush1.xpose.msra.mxu0 %v500
        %585 = vmatprep.subr.mxu0 0.0
        %586 = vmatpush1.xpose.msra.mxu0 %v503
        %587 = vmatprep.subr.mxu0 0.0
        %588 = vmatpush1.xpose.msra.mxu0 %v506
        %589 = vmatprep.subr.mxu0 0.0
        %590 = vmatpush1.xpose.msra.mxu0 %v509
        %591 = vmatprep.subr.mxu0 0.0
        %592 = vmatpush1.xpose.msra.mxu0 %v512
        %593 = vmatprep.subr.mxu0 0.0
        %594 = vmatpush1.xpose.msra.mxu0 %v515
        %595 = vmatprep.subr.mxu0 0.0
        %596 = vmatpush1.xpose.msra.mxu0 %v518
        %597 = vmatprep.subr.mxu0 0.0
        %598 = vmatpush1.xpose.msra.mxu0 %v521
        %599 = vmatprep.subr.mxu0 0.0
        %600 = vmatpush1.xpose.msra.mxu0 %v524
        %601 = vmatprep.subr.mxu0 0.0
        %602 = vmatpush1.xpose.msra.mxu0 %v527
        %603 = vmatprep.subr.mxu0 0.0
        %604 = vmatpush1.xpose.msra.mxu0 %v530
        %605 = vmatprep.subr.mxu0 0.0
        %606 = vmatpush1.xpose.msra.mxu0 %v533
        %607 = vmatprep.subr.mxu0 0.0
        %608 = vmatpush1.xpose.msra.mxu0 %v536
        %609 = vmatprep.subr.mxu0 0.0
        %610 = vmatpush1.xpose.msra.mxu0 %v539
        %611 = vmatprep.subr.mxu0 0.0
        %612 = vmatpush1.xpose.msra.mxu0 %v542
        %613 = vmatprep.subr.mxu0 0.0
        %614 = vmatpush1.xpose.msra.mxu0 %v545
        %615 = vmatprep.subr.mxu0 0.0
        %616 = vmatpush1.xpose.msra.mxu0 %v548
        %617 = vmatprep.subr.mxu0 0.0
        %618 = vmatpush1.xpose.msra.mxu0 %v551
        %619 = vmatprep.subr.mxu0 0.0
        %620 = vmatpush1.xpose.msra.mxu0 %v554
        %621 = vmatprep.subr.mxu0 0.0
        %622 = vmatpush1.xpose.msra.mxu0 %v557
        %623 = vmatprep.mubr.f32.mxu0 0.0
        %624 = vmatmul.mubr.f32.gmra.mrb[0].mxu0 %v452
        %v625 = vpop.f32.mrb[0].mxu0
        %v626 = vadd.f32 %v433, %v625
        %v627 = vpop.f32.mrb[0].mxu0
        %v628 = vadd.f32 %v433, %v627
        %629 = vmatprep.mubr.f32.mxu0 0.0
        %630 = vmatmul.mubr.f32.gmra.mrb[0].mxu0 %v455
        %v631 = vpop.f32.mrb[0].mxu0
        %v632 = vadd.f32 %v438, %v631
        %v633 = vpop.f32.mrb[0].mxu0
        %v634 = vadd.f32 %v438, %v633
        %635 = vmatprep.mubr.f32.mxu0 0.0
        %636 = vmatmul.mubr.f32.gmra.mrb[0].mxu0 %v458
        %v637 = vpop.f32.mrb[0].mxu0
        %v638 = vadd.f32 %v443, %v637
        %v639 = vpop.f32.mrb[0].mxu0
        %v640 = vadd.f32 %v443, %v639
        %641 = vmatprep.mubr.f32.mxu0 0.0
        %642 = vmatmul.mubr.f32.gmra.mrb[0].mxu0 %v461
        %v643 = vpop.f32.mrb[0].mxu0
        %v644 = vadd.f32 %v448, %v643
        %v645 = vpop.f32.mrb[0].mxu0
        %v646 = vadd.f32 %v448, %v645
        %647 = vdwg.mxu0
        %v648 = vmax.f32 %v626, 0.0
        %v649 = vmax.f32 %v628, 0.0
        %v650 = vmax.f32 %v632, 0.0
        %v651 = vmax.f32 %v634, 0.0
        %v652 = vmax.f32 %v638, 0.0
        %v653 = vmax.f32 %v640, 0.0
        %v654 = vmax.f32 %v644, 0.0
        %v655 = vmax.f32 %v646, 0.0
        %v656 = vld [vmem:[%s3] sm:$0xff]
        %v657 = vld [vmem:[%s3 + $0x8] sm:$0xff]
        %v658 = vld [vmem:[%s4] sm:$0xff]
        %v659 = vld [vmem:[%s4 + $0x8] sm:$0xff]
        %661 = vset.pattern.permute.xlu0 0
        %662 = vperm.xlu0 %661, %v658
        %v663 = vpop.permute.xlu0 %662
        %666 = vset.pattern.permute.xlu0 0
        %667 = vperm.xlu0 %666, %v659
        %v668 = vpop.permute.xlu0 %667
        %v671 = vsel %vm450, %v656, 0
        %v674 = vsel %vm450, %v657, 0
        %676 = vmatprep.subr.mxu0 %v649
        %677 = vmatpush1.msra.mxu0 %v648
        %678 = vmatprep.subr.mxu0 %v651
        %679 = vmatpush1.msra.mxu0 %v650
        %680 = vmatprep.subr.mxu0 %v653
        %681 = vmatpush1.msra.mxu0 %v652
        %682 = vmatprep.subr.mxu0 %v655
        %683 = vmatpush1.msra.mxu0 %v654
        %684 = vmatprep.subr.mxu0 0.0
        %685 = vmatpush1.msra.mxu0 0.0
        %686 = vmatprep.subr.mxu0 0.0
        %687 = vmatpush1.msra.mxu0 0.0
        %688 = vmatprep.subr.mxu0 0.0
        %689 = vmatpush1.msra.mxu0 0.0
        %690 = vmatprep.subr.mxu0 0.0
        %691 = vmatpush1.msra.mxu0 0.0
        %692 = vmatprep.subr.mxu0 0.0
        %693 = vmatpush1.msra.mxu0 0.0
        %694 = vmatprep.subr.mxu0 0.0
        %695 = vmatpush1.msra.mxu0 0.0
        %696 = vmatprep.subr.mxu0 0.0
        %697 = vmatpush1.msra.mxu0 0.0
        %698 = vmatprep.subr.mxu0 0.0
        %699 = vmatpush1.msra.mxu0 0.0
        %700 = vmatprep.subr.mxu0 0.0
        %701 = vmatpush1.msra.mxu0 0.0
        %702 = vmatprep.subr.mxu0 0.0
        %703 = vmatpush1.msra.mxu0 0.0
        %704 = vmatprep.subr.mxu0 0.0
        %705 = vmatpush1.msra.mxu0 0.0
        %706 = vmatprep.subr.mxu0 0.0
        %707 = vmatpush1.msra.mxu0 0.0
        %708 = vmatprep.subr.mxu0 0.0
        %709 = vmatpush1.msra.mxu0 0.0
        %710 = vmatprep.subr.mxu0 0.0
        %711 = vmatpush1.msra.mxu0 0.0
        %712 = vmatprep.subr.mxu0 0.0
        %713 = vmatpush1.msra.mxu0 0.0
        %714 = vmatprep.subr.mxu0 0.0
        %715 = vmatpush1.msra.mxu0 0.0
        %716 = vmatprep.subr.mxu0 0.0
        %717 = vmatpush1.msra.mxu0 0.0
        %718 = vmatprep.subr.mxu0 0.0
        %719 = vmatpush1.msra.mxu0 0.0
        %720 = vmatprep.subr.mxu0 0.0
        %721 = vmatpush1.msra.mxu0 0.0
        %722 = vmatprep.subr.mxu0 0.0
        %723 = vmatpush1.msra.mxu0 0.0
        %724 = vmatprep.subr.mxu0 0.0
        %725 = vmatpush1.msra.mxu0 0.0
        %726 = vmatprep.subr.mxu0 0.0
        %727 = vmatpush1.msra.mxu0 0.0
        %728 = vmatprep.subr.mxu0 0.0
        %729 = vmatpush1.msra.mxu0 0.0
        %730 = vmatprep.subr.mxu0 0.0
        %731 = vmatpush1.msra.mxu0 0.0
        %732 = vmatprep.subr.mxu0 0.0
        %733 = vmatpush1.msra.mxu0 0.0
        %734 = vmatprep.subr.mxu0 0.0
        %735 = vmatpush1.msra.mxu0 0.0
        %736 = vmatprep.subr.mxu0 0.0
        %737 = vmatpush1.msra.mxu0 0.0
        %738 = vmatprep.subr.mxu0 0.0
        %739 = vmatpush1.msra.mxu0 0.0
        %740 = vmatprep.mubr.f32.mxu0 0.0
        %741 = vmatmul.mubr.f32.gmra.mrb[0].mxu0 %v671
        %v742 = vpop.f32.mrb[0].mxu0
        %v743 = vadd.f32 %v663, %v742
        %v744 = vpop.f32.mrb[0].mxu0
        %v745 = vadd.f32 %v663, %v744
        %746 = vmatprep.mubr.f32.mxu0 0.0
        %747 = vmatmul.mubr.f32.gmra.mrb[0].mxu0 %v674
        %v748 = vpop.f32.mrb[0].mxu0
        %v749 = vadd.f32 %v668, %v748
        %v750 = vpop.f32.mrb[0].mxu0
        %v751 = vadd.f32 %v668, %v750
        %752 = vdwg.mxu0
        %v753 = vmax.f32 %v743, 0.0
        %v754 = vmax.f32 %v745, 0.0
        %v755 = vmax.f32 %v749, 0.0
        %v756 = vmax.f32 %v751, 0.0
        %v757 = vld [vmem:[%s5] sm:$0xff]
        %v758 = vld [vmem:[%s5 + $0x8] sm:$0xff]
        %v759 = vld [vmem:[%s6] sm:$0xff]
        %v760 = vld [vmem:[%s6 + $0x8] sm:$0xff]
        %762 = vset.pattern.permute.xlu0 0
        %763 = vperm.xlu0 %762, %v759
        %v764 = vpop.permute.xlu0 %763
        %767 = vset.pattern.permute.xlu0 0
        %768 = vperm.xlu0 %767, %v760
        %v769 = vpop.permute.xlu0 %768
        %vm771 = vcmask 130048
        %v773 = vsel %vm771, %v757, 0
        %v776 = vsel %vm771, %v758, 0
        %778 = vmatprep.subr.mxu0 %v754
        %779 = vmatpush1.msra.mxu0 %v753
        %780 = vmatprep.subr.mxu0 %v756
        %781 = vmatpush1.msra.mxu0 %v755
        %782 = vmatprep.subr.mxu0 0.0
        %783 = vmatpush1.msra.mxu0 0.0
        %784 = vmatprep.subr.mxu0 0.0
        %785 = vmatpush1.msra.mxu0 0.0
        %786 = vmatprep.subr.mxu0 0.0
        %787 = vmatpush1.msra.mxu0 0.0
        %788 = vmatprep.subr.mxu0 0.0
        %789 = vmatpush1.msra.mxu0 0.0
        %790 = vmatprep.subr.mxu0 0.0
        %791 = vmatpush1.msra.mxu0 0.0
        %792 = vmatprep.subr.mxu0 0.0
        %793 = vmatpush1.msra.mxu0 0.0
        %794 = vmatprep.subr.mxu0 0.0
        %795 = vmatpush1.msra.mxu0 0.0
        %796 = vmatprep.subr.mxu0 0.0
        %797 = vmatpush1.msra.mxu0 0.0
        %798 = vmatprep.subr.mxu0 0.0
        %799 = vmatpush1.msra.mxu0 0.0
        %800 = vmatprep.subr.mxu0 0.0
        %801 = vmatpush1.msra.mxu0 0.0
        %802 = vmatprep.subr.mxu0 0.0
        %803 = vmatpush1.msra.mxu0 0.0
        %804 = vmatprep.subr.mxu0 0.0
        %805 = vmatpush1.msra.mxu0 0.0
        %806 = vmatprep.subr.mxu0 0.0
        %807 = vmatpush1.msra.mxu0 0.0
        %808 = vmatprep.subr.mxu0 0.0
        %809 = vmatpush1.msra.mxu0 0.0
        %810 = vmatprep.subr.mxu0 0.0
        %811 = vmatpush1.msra.mxu0 0.0
        %812 = vmatprep.subr.mxu0 0.0
        %813 = vmatpush1.msra.mxu0 0.0
        %814 = vmatprep.subr.mxu0 0.0
        %815 = vmatpush1.msra.mxu0 0.0
        %816 = vmatprep.subr.mxu0 0.0
        %817 = vmatpush1.msra.mxu0 0.0
        %818 = vmatprep.subr.mxu0 0.0
        %819 = vmatpush1.msra.mxu0 0.0
        %820 = vmatprep.subr.mxu0 0.0
        %821 = vmatpush1.msra.mxu0 0.0
        %822 = vmatprep.subr.mxu0 0.0
        %823 = vmatpush1.msra.mxu0 0.0
        %824 = vmatprep.subr.mxu0 0.0
        %825 = vmatpush1.msra.mxu0 0.0
        %826 = vmatprep.subr.mxu0 0.0
        %827 = vmatpush1.msra.mxu0 0.0
        %828 = vmatprep.subr.mxu0 0.0
        %829 = vmatpush1.msra.mxu0 0.0
        %830 = vmatprep.subr.mxu0 0.0
        %831 = vmatpush1.msra.mxu0 0.0
        %832 = vmatprep.subr.mxu0 0.0
        %833 = vmatpush1.msra.mxu0 0.0
        %834 = vmatprep.subr.mxu0 0.0
        %835 = vmatpush1.msra.mxu0 0.0
        %836 = vmatprep.subr.mxu0 0.0
        %837 = vmatpush1.msra.mxu0 0.0
        %838 = vmatprep.subr.mxu0 0.0
        %839 = vmatpush1.msra.mxu0 0.0
        %840 = vmatprep.subr.mxu0 0.0
        %841 = vmatpush1.msra.mxu0 0.0
        %842 = vmatprep.mubr.f32.mxu0 0.0
        %843 = vmatmul.mubr.f32.gmra.mrb[0].mxu0 %v773
        %v844 = vpop.f32.mrb[0].mxu0
        %v845 = vadd.f32 %v764, %v844
        %v846 = vpop.f32.mrb[0].mxu0
        %v847 = vadd.f32 %v764, %v846
        %848 = vmatprep.mubr.f32.mxu0 0.0
        %849 = vmatmul.mubr.f32.gmra.mrb[0].mxu0 %v776
        %v850 = vpop.f32.mrb[0].mxu0
        %v851 = vadd.f32 %v769, %v850
        %v852 = vpop.f32.mrb[0].mxu0
        %v853 = vadd.f32 %v769, %v852
        %854 = vdwg.mxu0
        %v855 = vmax.f32 %v845, 0.0
        %v856 = vmax.f32 %v847, 0.0
        %v857 = vmax.f32 %v851, 0.0
        %v858 = vmax.f32 %v853, 0.0
        %v859 = vld [vmem:[%s7] sm:$0xff]
        %v860 = vld [vmem:[%s7 + $0x8] sm:$0xff]
        %v861 = vld [vmem:[%s8] sm:$0xff]
        %v862 = vld [vmem:[%s8 + $0x8] sm:$0xff]
        %864 = vset.pattern.permute.xlu0 0
        %865 = vperm.xlu0 %864, %v861
        %v866 = vpop.permute.xlu0 %865
        %869 = vset.pattern.permute.xlu0 0
        %870 = vperm.xlu0 %869, %v862
        %v871 = vpop.permute.xlu0 %870
        %v874 = vsel %vm771, %v859, 0
        %v877 = vsel %vm771, %v860, 0
        %879 = vmatprep.subr.mxu0 %v856
        %880 = vmatpush1.msra.mxu0 %v855
        %881 = vmatprep.subr.mxu0 %v858
        %882 = vmatpush1.msra.mxu0 %v857
        %883 = vmatprep.subr.mxu0 0.0
        %884 = vmatpush1.msra.mxu0 0.0
        %885 = vmatprep.subr.mxu0 0.0
        %886 = vmatpush1.msra.mxu0 0.0
        %887 = vmatprep.subr.mxu0 0.0
        %888 = vmatpush1.msra.mxu0 0.0
        %889 = vmatprep.subr.mxu0 0.0
        %890 = vmatpush1.msra.mxu0 0.0
        %891 = vmatprep.subr.mxu0 0.0
        %892 = vmatpush1.msra.mxu0 0.0
        %893 = vmatprep.subr.mxu0 0.0
        %894 = vmatpush1.msra.mxu0 0.0
        %895 = vmatprep.subr.mxu0 0.0
        %896 = vmatpush1.msra.mxu0 0.0
        %897 = vmatprep.subr.mxu0 0.0
        %898 = vmatpush1.msra.mxu0 0.0
        %899 = vmatprep.subr.mxu0 0.0
        %900 = vmatpush1.msra.mxu0 0.0
        %901 = vmatprep.subr.mxu0 0.0
        %902 = vmatpush1.msra.mxu0 0.0
        %903 = vmatprep.subr.mxu0 0.0
        %904 = vmatpush1.msra.mxu0 0.0
        %905 = vmatprep.subr.mxu0 0.0
        %906 = vmatpush1.msra.mxu0 0.0
        %907 = vmatprep.subr.mxu0 0.0
        %908 = vmatpush1.msra.mxu0 0.0
        %909 = vmatprep.subr.mxu0 0.0
        %910 = vmatpush1.msra.mxu0 0.0
        %911 = vmatprep.subr.mxu0 0.0
        %912 = vmatpush1.msra.mxu0 0.0
        %913 = vmatprep.subr.mxu0 0.0
        %914 = vmatpush1.msra.mxu0 0.0
        %915 = vmatprep.subr.mxu0 0.0
        %916 = vmatpush1.msra.mxu0 0.0
        %917 = vmatprep.subr.mxu0 0.0
        %918 = vmatpush1.msra.mxu0 0.0
        %919 = vmatprep.subr.mxu0 0.0
        %920 = vmatpush1.msra.mxu0 0.0
        %921 = vmatprep.subr.mxu0 0.0
        %922 = vmatpush1.msra.mxu0 0.0
        %923 = vmatprep.subr.mxu0 0.0
        %924 = vmatpush1.msra.mxu0 0.0
        %925 = vmatprep.subr.mxu0 0.0
        %926 = vmatpush1.msra.mxu0 0.0
        %927 = vmatprep.subr.mxu0 0.0
        %928 = vmatpush1.msra.mxu0 0.0
        %929 = vmatprep.subr.mxu0 0.0
        %930 = vmatpush1.msra.mxu0 0.0
        %931 = vmatprep.subr.mxu0 0.0
        %932 = vmatpush1.msra.mxu0 0.0
        %933 = vmatprep.subr.mxu0 0.0
        %934 = vmatpush1.msra.mxu0 0.0
        %935 = vmatprep.subr.mxu0 0.0
        %936 = vmatpush1.msra.mxu0 0.0
        %937 = vmatprep.subr.mxu0 0.0
        %938 = vmatpush1.msra.mxu0 0.0
        %939 = vmatprep.subr.mxu0 0.0
        %940 = vmatpush1.msra.mxu0 0.0
        %941 = vmatprep.subr.mxu0 0.0
        %942 = vmatpush1.msra.mxu0 0.0
        %943 = vmatprep.mubr.f32.mxu0 0.0
        %944 = vmatmul.mubr.f32.gmra.mrb[0].mxu0 %v874
        %v945 = vpop.f32.mrb[0].mxu0
        %v946 = vadd.f32 %v866, %v945
        %v947 = vpop.f32.mrb[0].mxu0
        %v948 = vadd.f32 %v866, %v947
        %949 = vmatprep.mubr.f32.mxu0 0.0
        %950 = vmatmul.mubr.f32.gmra.mrb[0].mxu0 %v877
        %v951 = vpop.f32.mrb[0].mxu0
        %v952 = vadd.f32 %v871, %v951
        %v953 = vpop.f32.mrb[0].mxu0
        %v954 = vadd.f32 %v871, %v953
        %955 = vdwg.mxu0
        %v956 = vmax.f32 %v946, 0.0
        %v957 = vmax.f32 %v948, 0.0
        %v958 = vmax.f32 %v952, 0.0
        %v959 = vmax.f32 %v954, 0.0
        %v960 = vld [vmem:[%s9] sm:$0xff]
        %v961 = vld [vmem:[%s9 + $0x8] sm:$0xff]
        %963 = vset.pattern.permute.xlu0 0
        %964 = vperm.xlu0 %963, %v960
        %v965 = vpop.permute.xlu0 %964
        %968 = vset.pattern.permute.xlu0 0
        %969 = vperm.xlu0 %968, %v961
        %v970 = vpop.permute.xlu0 %969
        %v972 = vmul.f32 %v965, %v956
        %v973 = vmul.f32 %v965, %v957
        %v974 = vmul.f32 %v970, %v958
        %v975 = vmul.f32 %v970, %v959
        %v976 = vadd.f32 %v972, %v974
        %v977 = vrot.slane %v976, 4
        %v978 = vadd.f32 %v976, %v977
        %v979 = vrot.slane %v978, 2
        %v980 = vadd.f32 %v978, %v979
        %v981 = vrot.slane %v980, 1
        %v982 = vadd.f32 %v980, %v981
        %v983 = vadd.f32 %v973, %v975
        %v984 = vrot.slane %v983, 4
        %v985 = vadd.f32 %v983, %v984
        %v986 = vrot.slane %v985, 2
        %v987 = vadd.f32 %v985, %v986
        %v988 = vrot.slane %v987, 1
        %v989 = vadd.f32 %v987, %v988
        %v990 = vld [vmem:[#allocation2] sm:$0x1]
        %992 = vset.pattern.permute.xlu0 0
        %993 = vperm.xlu0 %992, %v990
        %v994 = vpop.permute.xlu0 %993
        %v996 = vlaneseq
        %v997 = vshrl.u32 %v996, 7
        %v998 = vsub.s32 0, %v997
        %v999 = vrot.slane %v994, %v998
        %v1000 = vadd.f32 %v982, %v999
        %v1001 = vadd.f32 %v989, %v999
        %v1004 = vcombine.low %v1000, %v1001
        %v1006 = vunpack.c.l.s4 1966171168
        %v1007 = vunpack.c.0.s8 %v1006
        %v1008 = vlaneseq
        %v1009 = vshrl.u32 %v1008, 7
        %v1010 = vsub.s32 %v1007, %v1009
        %v1011 = vrot.slane %v1004, %v1010
        %v1013 = vunpack.c.l.s4 1966171168
        %v1014 = vunpack.c.0.s8 %v1013
        %v1015 = vlaneseq
        %v1016 = vshrl.u32 %v1015, 7
        %v1017 = vsub.s32 %v1014, %v1016
        %v1018 = vrot.slane %v1011, %v1017
        %v1020 = vlaneseq
        %vm1021 = vcmp.ge.s32.totalorder %v1020, 0
        %vm1022 = vcmp.lt.s32.totalorder %v1020, 256
        %vm1023 = vmand %vm1021, %vm1022
        %1024 = vst.msk [vmem:[%s382] sm:$0x3] %vm1023, %v1018
        %s1025 = sand.u32 %s271, 1
        %s1026 = scalar_lea.sflag [#allocation4], %s1025
        %s1027 = sand.u32 %s271, 1
        %s1028 = smul.addr %s1027, 2
        %s1029 = scalar_lea.vmem [#allocation3], %s1028
        // Predicated region
        $region65: #{tpu_custom_call.1} parent=63 // pred_check
          %p1030 = pneg %p281
        $region66: #{tpu_custom_call.1} parent=63 // pred_check_branch
          %1032 = sbr.rel (%p1030) target = $region68
        $region67: #{tpu_custom_call.1} parent=63 // pred_region
          %s1033 = smul.u32 2, %s27
          %s1035 = ssub.s32 32, 32
          %1036 = vsyncadd %s1026, %s1035
          %s1037 = smul.addr %s1033, 16
          %s1038 = scalar_lea.hbm %s11, %s1037
          %s1040 = sshll.u32 %s1029, 4
          %s1041 = int_to_ptr.vmem [resolvable:$true] %s1040
          %1043 = dma.vmem_to_hbm [thread:$0]  %s1041, 32, %s1038, %s1026
        $region68: #{tpu_custom_call.1} parent=63 // pred_fallthru
          _
      $region64: #{tpu_custom_call.1} parent=5 // pred_fallthru
        _
      %p1044 = scmp.le.s32.totalorder 2, %s22
      // Predicated region
      $region69: #{tpu_custom_call.1} parent=5 // pred_check
        %p1045 = pneg %p1044
      $region70: #{tpu_custom_call.1} parent=5 // pred_check_branch
        %1047 = sbr.rel (%p1045) target = $region72
      $region71: #{tpu_custom_call.1} parent=5 // pred_region
        %s1048 = ssub.s32 %s22, 2
        // Predicated region
        $region73: #{tpu_custom_call.1} parent=71 // pred_check
          %p1049 = pneg %p287
        $region74: #{tpu_custom_call.1} parent=71 // pred_check_branch
          %1051 = sbr.rel (%p1049) target = $region76
        $region75: #{tpu_custom_call.1} parent=71 // pred_region
          %s1052 = sand.u32 %s272, 1
          %s1053 = scalar_lea.sflag [#allocation4], %s1052
          %s1054 = sand.u32 %s272, 1
          %s1055 = smul.addr %s1054, 2
          %s1056 = scalar_lea.vmem [#allocation3], %s1055
          %1057 = dma.done %s1053, 32
        $region76: #{tpu_custom_call.1} parent=71 // pred_fallthru
          _
      $region72: #{tpu_custom_call.1} parent=5 // pred_fallthru
        _
    $region6: #{tpu_custom_call.1} parent=1 // loop_footer
      %s26 = sadd.s32 1, %s22
    $region7: #{tpu_custom_call.1} parent=1 // loop_footer_branch
      %21 = sbr.rel target = $region3
    $region8: #{tpu_custom_call.1} parent=1 // loop_exit
      _
    %1058 = vsyncpa [#allocation4], 1
    %s1059 = scalar_lea.sflag [#allocation4], 1
    %1060 = vsyncpa %s1059, 1

</llo_original>
